<compile_context>
chip_gen: v6e
topology: v6e:2x2x1
jax: 0.10.0
libtpu: 0.0.40
codegen_flags: <defaults>
</compile_context>

<pallas_src>
import functools
import math

import jax
import jax.numpy as jnp
from jax.experimental import pallas as pl
from jax.experimental.pallas import tpu as pltpu

_LANE = 128
_SUBLANE = 8


# ----------------------------------------------------------------------------
# Pallas kernel: flat-row projection + fused (bias + position + CLS) add.
#   o[r, :] = x[r, :] @ W + pos[r, :]
# ----------------------------------------------------------------------------
def _vit_embed_kernel(x_ref, w_ref, pos_ref, o_ref):
    # x_ref:   (R, S)   flattened batch*token patch rows (CLS rows are zeros)
    # w_ref:   (S, Hp)  projection weight (resident across grid)
    # pos_ref: (R, Hp)  pre-tiled fused constant (cls+pos / pos+bias), resident
    # o_ref:   (R, Hp)  final embeddings
    o_ref[...] = (
        jnp.dot(x_ref[...], w_ref[...], preferred_element_type=jnp.float32)
        + pos_ref[...]
    ).astype(o_ref.dtype)


def _pick_batch_tile(batch, p1, s, hp, *, itemsize=4,
                     tile_budget_bytes=20 * 1024 * 1024,
                     target_rows=2048, min_rows=512, min_grid_steps=4):
    """Batches per grid step (row tile R = bt * p1 rows).

    Per-step VMEM working set, every stream conservatively double-buffered:
        2*R*s (input) + 2*R*hp (output) + 2*R*hp (tiled pos) + 2*s*hp (weight).
    """
    bytes_per_row = itemsize * (2 * s + 4 * hp)
    fixed_bytes = itemsize * 2 * s * hp
    rows_cap = max(p1, (tile_budget_bytes - fixed_bytes) // max(bytes_per_row, 1))
    bt = max(1, min(batch, rows_cap // p1, max(1, target_rows // p1)))

    # v7x has two TensorCores: prefer >= min_grid_steps grid steps (megacore
    # sharding + DMA/compute overlap), but never shrink a step below ~min_rows
    # token rows where the ~0.35us per-step overhead dominates.
    bt_for_steps = -(-batch // min_grid_steps)
    if bt_for_steps * p1 >= min_rows:
        bt = min(bt, bt_for_steps)

    if bt >= batch:
        return batch  # single block == full array; no sublane constraint

    # Multi-step grid: keep the row tile a multiple of 8 sublanes.
    g = _SUBLANE // math.gcd(p1, _SUBLANE)
    bt = max(g, (bt // g) * g)
    return min(bt, batch)


# ----------------------------------------------------------------------------
# ViTEmbeddings forward (bool_masked_pos=None, interpolate_pos_encoding=False,
# hidden_dropout_prob=0.0 so dropout is identity).
# ----------------------------------------------------------------------------
def vit_embeddings_forward(pixel_values, params, *, num_patches, patch_size,
                           tile_budget_bytes=20 * 1024 * 1024,
                           target_rows=2048):
    B, feature_size = pixel_values.shape
    P, S = num_patches, patch_size
    P1 = P + 1
    H = params["proj_w"].shape[1]
    tail_pad = P * S - feature_size

    # Lane-dense output: pad the hidden dim up to a multiple of 128 (protects
    # small/test H from masked vst partial stores; no-op for H % 128 == 0).
    Hp = max(_LANE, -(-H // _LANE) * _LANE)

    # Augmented + flattened patch rows: row b*(P+1) is the all-zero CLS slot of
    # batch b; rows b*(P+1)+1 .. b*(P+1)+P are its (tail-padded) patches.
    # With allow_input_fusion below, XLA may fuse this pad+reshape into the
    # kernel's input path instead of materializing x_flat in HBM.
    x_flat = jnp.pad(pixel_values, ((0, 0), (S, tail_pad))).reshape(B * P1, S)

    # Fold projection bias and CLS token into one per-token constant.
    pos_plus = jnp.concatenate(
        [params["cls_token"] + params["pos_emb"][0:1],    # CLS row (no proj_b)
         params["pos_emb"][1:] + params["proj_b"]],       # patch rows
        axis=0)                                            # (P+1, H)

    w = params["proj_w"]
    if Hp != H:
        w = jnp.pad(w, ((0, 0), (0, Hp - H)))
        pos_plus = jnp.pad(pos_plus, ((0, 0), (0, Hp - H)))

    out_dtype = jnp.result_type(pixel_values.dtype, params["proj_w"].dtype)

    bt = _pick_batch_tile(B, P1, S, Hp,
                          tile_budget_bytes=tile_budget_bytes,
                          target_rows=target_rows)
    R = bt * P1                       # rows per grid step (multiple of P+1)
    grid_steps = -(-B // bt)          # cdiv: edge block handled by Pallas

    # Pre-tiled resident constant: blocks always start at a batch boundary
    # (R is a multiple of P+1), so one (R, Hp) tile serves every grid step.
    pos_tiled = jnp.tile(pos_plus, (bt, 1)).astype(out_dtype)

    step_bytes = 4 * (2 * R * S + 4 * R * Hp + 2 * S * Hp)
    vmem_limit = min(60 * 1024 * 1024,
                     max(32 * 1024 * 1024, int(1.5 * step_bytes)))

    cost = pl.CostEstimate(
        flops=2 * B * P1 * S * Hp,
        transcendentals=0,
        bytes_accessed=(x_flat.size * x_flat.dtype.itemsize
                        + w.size * w.dtype.itemsize
                        + pos_tiled.size * pos_tiled.dtype.itemsize
                        + B * P1 * Hp * jnp.dtype(out_dtype).itemsize),
    )

    out_flat = pl.pallas_call(
        _vit_embed_kernel,
        out_shape=jax.ShapeDtypeStruct((B * P1, Hp), out_dtype),
        grid_spec=pltpu.PrefetchScalarGridSpec(
            num_scalar_prefetch=0,
            grid=(grid_steps,),
            in_specs=[
                pl.BlockSpec((R, S), lambda i: (i, 0)),    # flat patch rows
                pl.BlockSpec((S, Hp), lambda i: (0, 0)),   # weight (resident)
                pl.BlockSpec((R, Hp), lambda i: (0, 0)),   # pos const (resident)
            ],
            out_specs=pl.BlockSpec((R, Hp), lambda i: (i, 0)),
        ),
        compiler_params=pltpu.CompilerParams(
            dimension_semantics=("parallel",),
            vmem_limit_bytes=vmem_limit,
            allow_input_fusion=[True, False, False],
        ),
        cost_estimate=cost,
    )(x_flat, w, pos_tiled)

    out = out_flat.reshape(B, P1, Hp)
    if Hp != H:
        out = out[:, :, :H]
    return out


# ----------------------------------------------------------------------------
# Pure-JAX reference (mirrors the PyTorch module exactly).
# ----------------------------------------------------------------------------
def vit_embeddings_ref(pixel_values, params, *, num_patches, patch_size):
    B, feature_size = pixel_values.shape
    pad = num_patches * patch_size - feature_size
    x = jnp.pad(pixel_values, ((0, 0), (0, pad))).reshape(
        B, num_patches, patch_size)
    proj = jnp.einsum("bps,sh->bph", x, params["proj_w"]) + params["proj_b"]
    H = params["proj_w"].shape[1]
    cls = jnp.broadcast_to(params["cls_token"][None, :, :], (B, 1, H))
    emb = jnp.concatenate([cls, proj], axis=1)
    return emb + params["pos_emb"][None, :, :]


if __name__ == "__main__":
    # Small config consistent with the module's shapes:
    #   feature_size=60, num_patches=8 -> patch_size=ceil(60/8)=8, pad_size=4
    #   hidden_size=32, batch=2
    batch = 2
    feature_size = 60
    num_patches = 8
    hidden_size = 32
    patch_size = -(-feature_size // num_patches)   # ceil
    assert patch_size == 8

    key = jax.random.PRNGKey(0)
    k_x, k_w, k_b, k_cls, k_pos = jax.random.split(key, 5)

    pixel_values = jax.random.normal(k_x, (batch, feature_size), jnp.float32)

    params = {
        # Linear(patch_size, hidden_size): stored pre-transposed as [S, H]
        "proj_w": jax.random.normal(
            k_w, (patch_size, hidden_size), jnp.float32) * 0.02,
        "proj_b": jax.random.normal(k_b, (1, hidden_size), jnp.float32) * 0.02,
        # nn.Parameter(torch.zeros(...)) in __init__, but initialized with
        # deterministic random values here so the adds are non-trivial.
        "cls_token": jax.random.normal(
            k_cls, (1, hidden_size), jnp.float32) * 0.02,
        "pos_emb": jax.random.normal(
            k_pos, (num_patches + 1, hidden_size), jnp.float32) * 0.02,
    }

    fwd = jax.jit(functools.partial(vit_embeddings_forward,
                                    num_patches=num_patches,
                                    patch_size=patch_size))
    out = jax.block_until_ready(fwd(pixel_values, params))

    ref = vit_embeddings_ref(pixel_values, params,
                             num_patches=num_patches, patch_size=patch_size)
    assert out.shape == (batch, num_patches + 1, hidden_size), out.shape
    assert out.dtype == ref.dtype
    assert jnp.allclose(out, ref, atol=1e-5, rtol=1e-5)

    print("KERNEL_OK")
</pallas_src>

<mosaic_0001>
module attributes {stable_mosaic.version = 11 : i64} {
  func.func @_vit_embed_kernel(%arg0: i32, %arg1: memref<18x8xf32, #tpu.memory_space<vmem>>, %arg2: memref<8x128xf32, #tpu.memory_space<vmem>>, %arg3: memref<18x128xf32, #tpu.memory_space<vmem>>, %arg4: memref<18x128xf32, #tpu.memory_space<vmem>>) attributes {dimension_semantics = [#tpu.dimension_semantics<parallel>], iteration_bounds = array<i64: 1>, scalar_prefetch = 0 : i64, scratch_operands = 0 : i64, tpu.core_type = #tpu.core_type<tc>, window_params = [{transform_indices = @transform_0, window_bounds = array<i64: 18, 8>}, {pipeline_mode = #tpu.pipeline_mode<synchronous>, transform_indices = @transform_1, window_bounds = array<i64: 8, 128>}, {pipeline_mode = #tpu.pipeline_mode<synchronous>, transform_indices = @transform_2, window_bounds = array<i64: 18, 128>}, {transform_indices = @transform_3, window_bounds = array<i64: 18, 128>}]} {
    %c0 = arith.constant 0 : index
    %c0_0 = arith.constant 0 : index
    %0 = vector.load %arg1[%c0, %c0_0] : memref<18x8xf32, #tpu.memory_space<vmem>>, vector<18x8xf32>
    %c0_1 = arith.constant 0 : index
    %c0_2 = arith.constant 0 : index
    %1 = vector.load %arg2[%c0_1, %c0_2] : memref<8x128xf32, #tpu.memory_space<vmem>>, vector<8x128xf32>
    %cst = arith.constant dense<0.000000e+00> : vector<18x128xf32>
    %2 = tpu.matmul %0, %1, %cst {dimension_numbers = #tpu.dot_dimension_numbers<[1], [0], [0], [1], [0, 0, 1, 1], [], []>} : vector<18x8xf32>, vector<8x128xf32>, vector<18x128xf32> -> vector<18x128xf32>
    %c0_3 = arith.constant 0 : index
    %c0_4 = arith.constant 0 : index
    %3 = vector.load %arg3[%c0_3, %c0_4] : memref<18x128xf32, #tpu.memory_space<vmem>>, vector<18x128xf32>
    %4 = arith.addf %2, %3 : vector<18x128xf32>
    %c0_5 = arith.constant 0 : index
    %c0_6 = arith.constant 0 : index
    %5 = vector.load %arg4[%c0_5, %c0_6] : memref<18x128xf32, #tpu.memory_space<vmem>>, vector<18x128xf32>
    tpu.vector_store %arg4[%c0_5, %c0_6], %4 {strides = array<i32>} : memref<18x128xf32, #tpu.memory_space<vmem>>, vector<18x128xf32>,
    return
  }
  func.func @transform_0(%arg0: i32) -> (i32, i32) {
    %c0_i32 = arith.constant 0 : i32
    %c0_i32_0 = arith.constant 0 : i32
    return %arg0, %c0_i32 : i32, i32
  }
  func.func @transform_1(%arg0: i32) -> (i32, i32) {
    %c0_i32 = arith.constant 0 : i32
    %c0_i32_0 = arith.constant 0 : i32
    %c0_i32_1 = arith.constant 0 : i32
    return %c0_i32, %c0_i32_0 : i32, i32
  }
  func.func @transform_2(%arg0: i32) -> (i32, i32) {
    %c0_i32 = arith.constant 0 : i32
    %c0_i32_0 = arith.constant 0 : i32
    %c0_i32_1 = arith.constant 0 : i32
    return %c0_i32, %c0_i32_0 : i32, i32
  }
  func.func @transform_3(%arg0: i32) -> (i32, i32) {
    %c0_i32 = arith.constant 0 : i32
    %c0_i32_0 = arith.constant 0 : i32
    return %arg0, %c0_i32 : i32, i32
  }
}

</mosaic_0001>

<llo_original>
// kernel: tile.9
$region0: #{tile.9}
  %s0 = inlined_call_operand.vmem [shape: f32[2,9,128], index: 0, kind: input, shape index: {}]
  %s1 = inlined_call_operand.vmem [shape: f32[18,128], index: 1, kind: output, shape index: {}]
  %v2 = vld [vmem:[%s0] sm:$0xff]
  %3 = vst [vmem:[%s1] sm:$0xff] %v2
  %s4 = scalar_lea.vmem %s0, 8
  %s5 = smov 3
  %v6 = vld [vmem:[%s4] ss:$8 sm:%s5]
  %s7 = scalar_lea.vmem %s1, 8
  %8 = vst [vmem:[%s7] sm:$0x3] %v6
  %s9 = scalar_lea.vmem %s0, 17
  %v10 = vld [vmem:[%s9] sm:$0xff]
  %s11 = scalar_lea.vmem %s1, 10
  %12 = vst [vmem:[%s11] sm:$0xff] %v10

// kernel: vit_embeddings_forward.1
$region0: #{vit_embeddings_forward.1}
  #allocation0 [shape = 'u32[]', space=smem, size = 0x4, offset = 0x4, fixed_abs, tag = 'smem constant byte address 0x4 - core index']
  #allocation1 [shape = 'u32[144,128]{1,0:T(1,128)}', space=vmem, size = 0x12000, scoped, tag = 'internal scratch']
  %s0 = inlined_call_operand.vmem [shape: f32[18,8], index: 0, kind: input, shape index: {}]
  %s1 = inlined_call_operand.vmem [shape: f32[8,128], index: 1, kind: input, shape index: {}]
  %s2 = inlined_call_operand.vmem [shape: f32[18,128], index: 2, kind: input, shape index: {}]
  %s3 = inlined_call_operand.vmem [shape: f32[18,128], index: 3, kind: output, shape index: {}]
  %s4 = sld [smem:[#allocation0]]
  $region22: #{vit_embeddings_forward.1} parent=0
    _
  %s6 = ssub.s32 1, %s4
  %s7 = scalar_select 0, %s6, %s4
  // Predicated region
  $region2: #{vit_embeddings_forward.1} parent=0 // pred_check
    _
  $region3: #{vit_embeddings_forward.1} parent=0 // pred_check_branch
    %9 = sbr.rel (0) target = $region5
  $region4: #{vit_embeddings_forward.1} parent=0 // pred_region
    _
  $region5: #{vit_embeddings_forward.1} parent=0 // pred_fallthru
    _
  // Predicated region
  $region6: #{vit_embeddings_forward.1} parent=0 // pred_check
    _
  $region7: #{vit_embeddings_forward.1} parent=0 // pred_check_branch
    %11 = sbr.rel (0) target = $region9
  $region8: #{vit_embeddings_forward.1} parent=0 // pred_region
    _
  $region9: #{vit_embeddings_forward.1} parent=0 // pred_fallthru
    _
  // Predicated region
  $region10: #{vit_embeddings_forward.1} parent=0 // pred_check
    _
  $region11: #{vit_embeddings_forward.1} parent=0 // pred_check_branch
    %13 = sbr.rel (0) target = $region13
  $region12: #{vit_embeddings_forward.1} parent=0 // pred_region
    _
  $region13: #{vit_embeddings_forward.1} parent=0 // pred_fallthru
    _
  %v14 = vld [vmem:[%s0] sm:$0xff]
  %v15 = vld [vmem:[%s0 + $0x8] sm:$0xff]
  %v16 = vld [vmem:[%s0 + $0x10] sm:$0x3]
  %v17 = vld [vmem:[%s1] sm:$0xff]
  %v18 = vld [vmem:[%s2] sm:$0xff]
  %v19 = vld [vmem:[%s2 + $0x8] sm:$0xff]
  %v20 = vld [vmem:[%s2 + $0x10] sm:$0x3]
  %vm21 = vcmask 64512
  %v23 = vsel %vm21, %v14, 0
  %v26 = vsel %vm21, %v15, 0
  %v29 = vsel %vm21, %v16, 0
  %31 = vmatprep.subr.mxu0 0.0
  %32 = vmatpush1.msra.mxu0 0.0
  %33 = vmatprep.subr.mxu0 0.0
  %34 = vmatpush1.msra.mxu0 0.0
  %35 = vmatprep.subr.mxu0 0.0
  %36 = vmatpush1.msra.mxu0 0.0
  %37 = vmatprep.subr.mxu0 0.0
  %38 = vmatpush1.msra.mxu0 0.0
  %39 = vmatprep.subr.mxu0 0.0
  %40 = vmatpush1.msra.mxu0 0.0
  %41 = vmatprep.subr.mxu0 0.0
  %42 = vmatpush1.msra.mxu0 0.0
  %43 = vmatprep.subr.mxu0 0.0
  %44 = vmatpush1.msra.mxu0 0.0
  %45 = vmatprep.subr.mxu0 0.0
  %46 = vmatpush1.msra.mxu0 0.0
  %47 = vmatprep.subr.mxu0 0.0
  %48 = vmatpush1.msra.mxu0 0.0
  %49 = vmatprep.subr.mxu0 0.0
  %50 = vmatpush1.msra.mxu0 0.0
  %51 = vmatprep.subr.mxu0 0.0
  %52 = vmatpush1.msra.mxu0 0.0
  %53 = vmatprep.subr.mxu0 0.0
  %54 = vmatpush1.msra.mxu0 0.0
  %55 = vmatprep.subr.mxu0 0.0
  %56 = vmatpush1.msra.mxu0 0.0
  %57 = vmatprep.subr.mxu0 0.0
  %58 = vmatpush1.msra.mxu0 0.0
  %59 = vmatprep.subr.mxu0 0.0
  %60 = vmatpush1.msra.mxu0 0.0
  %61 = vmatprep.subr.mxu0 0.0
  %62 = vmatpush1.msra.mxu0 %v17
  %63 = vmatprep.subr.mxu0 0.0
  %64 = vmatpush2.msra.mxu0 0.0
  %65 = vmatprep.subr.mxu0 0.0
  %66 = vmatpush2.msra.mxu0 0.0
  %67 = vmatprep.subr.mxu0 0.0
  %68 = vmatpush2.msra.mxu0 0.0
  %69 = vmatprep.subr.mxu0 0.0
  %70 = vmatpush2.msra.mxu0 0.0
  %71 = vmatprep.subr.mxu0 0.0
  %72 = vmatpush2.msra.mxu0 0.0
  %73 = vmatprep.subr.mxu0 0.0
  %74 = vmatpush2.msra.mxu0 0.0
  %75 = vmatprep.subr.mxu0 0.0
  %76 = vmatpush2.msra.mxu0 0.0
  %77 = vmatprep.subr.mxu0 0.0
  %78 = vmatpush2.msra.mxu0 0.0
  %79 = vmatprep.subr.mxu0 0.0
  %80 = vmatpush2.msra.mxu0 0.0
  %81 = vmatprep.subr.mxu0 0.0
  %82 = vmatpush2.msra.mxu0 0.0
  %83 = vmatprep.subr.mxu0 0.0
  %84 = vmatpush2.msra.mxu0 0.0
  %85 = vmatprep.subr.mxu0 0.0
  %86 = vmatpush2.msra.mxu0 0.0
  %87 = vmatprep.subr.mxu0 0.0
  %88 = vmatpush2.msra.mxu0 0.0
  %89 = vmatprep.subr.mxu0 0.0
  %90 = vmatpush2.msra.mxu0 0.0
  %91 = vmatprep.subr.mxu0 0.0
  %92 = vmatpush2.msra.mxu0 0.0
  %93 = vmatprep.subr.mxu0 0.0
  %94 = vmatpush2.msra.mxu0 0.0
  %95 = vmatprep.mubr.f32.mxu0 0.0
  %96 = vmatmul.mubr.f32.gmra.mxu0 %v23
  %v97 = vpop.f32.mrf.mxu0
  %v98 = vadd.f32 %v18, %v97
  %v99 = vpop.f32.mrf.mxu0
  %100 = vmatprep.mubr.f32.mxu0 0.0
  %101 = vmatmul.mubr.f32.gmra.mxu0 %v26
  %v102 = vpop.f32.mrf.mxu0
  %v103 = vadd.f32 %v19, %v102
  %v104 = vpop.f32.mrf.mxu0
  %105 = vmatprep.mubr.f32.mxu0 0.0
  %106 = vmatmul.mubr.f32.gmra.mxu0 %v29
  %v107 = vpop.f32.mrf.mxu0
  %v108 = vadd.f32 %v20, %v107
  %v109 = vpop.f32.mrf.mxu0
  %110 = vdwg.mxu0
  %111 = vst [vmem:[%s3] sm:$0xff] %v98
  %112 = vst [vmem:[%s3 + $0x8] sm:$0xff] %v103
  %113 = vst [vmem:[%s3 + $0x10] sm:$0x3] %v108
  // Predicated region
  $region14: #{vit_embeddings_forward.1} parent=0 // pred_check
    _
  $region15: #{vit_embeddings_forward.1} parent=0 // pred_check_branch
    %115 = sbr.rel (0) target = $region17
  $region16: #{vit_embeddings_forward.1} parent=0 // pred_region
    _
  $region17: #{vit_embeddings_forward.1} parent=0 // pred_fallthru
    _
  // Predicated region
  $region18: #{vit_embeddings_forward.1} parent=0 // pred_check
    _
  $region19: #{vit_embeddings_forward.1} parent=0 // pred_check_branch
    %117 = sbr.rel (0) target = $region21
  $region20: #{vit_embeddings_forward.1} parent=0 // pred_region
    _
  $region21: #{vit_embeddings_forward.1} parent=0 // pred_fallthru
    _

</llo_original>
